<compile_context>
chip_gen: v7x
topology: tpu7x:2x2x1
jax: 0.10.0
libtpu: 0.0.40
codegen_flags: <defaults>
</compile_context>

<pallas_src>
import jax
import jax.numpy as jnp
from jax import lax
from jax.experimental import pallas as pl
from jax.experimental.pallas import tpu as pltpu


def _log_sigmoid(x):
    # numerically stable: logsigmoid(x) = min(x, 0) - log1p(exp(-|x|))
    return jnp.minimum(x, 0.0) - jnp.log1p(jnp.exp(-jnp.abs(x)))


def _round_up(x, m):
    return ((x + m - 1) // m) * m


def skipgram_loss(embeddings, target_idx, context_idx, negative_idx, *, tb=1024):
    """embeddings: (V, D) f32; target/context: (B,) int; negative: (B, K) int."""
    V, D = embeddings.shape
    B = int(target_idx.shape[0])
    K = int(negative_idx.shape[1])

    emb = embeddings.astype(jnp.float32)

    # --- gather in the wrapper (reviewer #11): XLA gather writes dense slabs,
    #     the kernel streams them back at HBM bandwidth with zero descriptors.
    t_emb = jnp.take(emb, target_idx.astype(jnp.int32), axis=0)              # (B, D)
    c_emb = jnp.take(emb, context_idx.astype(jnp.int32), axis=0)             # (B, D)
    n_emb = jnp.take(emb, negative_idx.astype(jnp.int32).reshape(-1), axis=0)
    n_emb = n_emb.reshape(B, K, D)                                            # (B, K, D)
    o_emb = jnp.concatenate([c_emb[:, None, :], n_emb], axis=1)              # (B, K+1, D)

    # --- batch tile sizing: big tile, but keep the double-buffered working set
    #     well inside every generation's scoped VMEM (v7x has only 64 MiB/TC).
    bytes_per_row = (K + 2) * D * 4          # target row + (K+1) other rows, f32
    budget = 24 << 20                        # conservative streaming budget
    max_tb = max(8, (budget // (4 * bytes_per_row)) // 8 * 8)
    TB = max(8, min(tb, max_tb, _round_up(B, 8)))
    TB = _round_up(TB, 8)
    num_tiles = -(-B // TB)
    pad = num_tiles * TB - B

    # Pad so every tile has TB rows; padded rows are zeros and get masked out.
    t_emb = jnp.pad(t_emb, ((0, pad), (0, 0)))
    o_emb = jnp.pad(o_emb, ((0, pad), (0, 0), (0, 0)))

    def kernel(t_ref, o_ref, out_ref):
        ti = pl.program_id(0)

        t = t_ref[...]                                        # (TB, D)
        o = o_ref[...]                                        # (TB, K+1, D)

        # All K+1 scores in one broadcasted multiply + lane reduce (no K loop).
        scores = jnp.sum(t[:, None, :] * o, axis=-1)          # (TB, K+1)

        # column 0 = positive (keep sign), columns 1..K = negatives (flip sign)
        col = lax.broadcasted_iota(jnp.int32, (TB, K + 1), 1)
        signed = jnp.where(col == 0, scores, -scores)
        ls = _log_sigmoid(signed)                              # (TB, K+1)

        # mask rows of the padded last tile
        row_ids = ti * TB + lax.broadcasted_iota(jnp.int32, (TB, K + 1), 0)
        maskf = (row_ids < B).astype(jnp.float32)

        per_row = jnp.sum(ls * maskf, axis=1, keepdims=True)  # (TB, 1)
        tile = jnp.sum(per_row, axis=0, keepdims=True)        # (1, 1)
        out_ref[...] = jnp.reshape(tile, (1, 1, 1))           # per-tile partial sum

    grid_spec = pltpu.PrefetchScalarGridSpec(
        num_scalar_prefetch=0,
        grid=(num_tiles,),
        in_specs=[
            pl.BlockSpec((TB, D), lambda i: (i, 0)),
            pl.BlockSpec((TB, K + 1, D), lambda i: (i, 0, 0)),
        ],
        out_specs=pl.BlockSpec((1, 1, 1), lambda i: (i, 0, 0)),
    )

    # double-buffered inputs + small slack; cap safely below v7x's 64 MiB
    vmem_need = 2 * 2 * TB * bytes_per_row + (1 << 20)
    vmem_limit = int(min(48 << 20, max(vmem_need, 8 << 20)))

    partials = pl.pallas_call(
        kernel,
        out_shape=jax.ShapeDtypeStruct((num_tiles, 1, 1), jnp.float32),
        grid_spec=grid_spec,
        compiler_params=pltpu.CompilerParams(
            dimension_semantics=("parallel",),   # per-tile partials -> megacore OK
            vmem_limit_bytes=vmem_limit,
        ),
    )(t_emb, o_emb)

    # final reduction over tiles in JAX (uses the global B, not TB)
    return -jnp.sum(partials) / jnp.float32(B)


def skipgram_loss_ref(embeddings, target_idx, context_idx, negative_idx):
    # pure-JAX reference mirroring the PyTorch forward
    t = embeddings[target_idx]
    c = embeddings[context_idx]
    n = embeddings[negative_idx]
    pos = jax.nn.log_sigmoid(jnp.sum(t * c, axis=1))
    neg = jnp.sum(jax.nn.log_sigmoid(-jnp.sum(t[:, None, :] * n, axis=2)), axis=1)
    return -jnp.mean(pos + neg)


if __name__ == "__main__":
    vocab_size = 32
    embedding_dim = 32
    negative_samples = 3
    batch = 10            # deliberately not a multiple of the tile size

    key = jax.random.PRNGKey(0)
    k_emb, k_t, k_c, k_n = jax.random.split(key, 4)

    # nn.Embedding default init: N(0, 1)
    embeddings = jax.random.normal(k_emb, (vocab_size, embedding_dim), jnp.float32)
    target_idx = jax.random.randint(k_t, (batch,), 0, vocab_size, jnp.int32)
    context_idx = jax.random.randint(k_c, (batch,), 0, vocab_size, jnp.int32)
    negative_idx = jax.random.randint(
        k_n, (batch, negative_samples), 0, vocab_size, jnp.int32
    )

    # tb=8 -> 2 grid tiles, last tile partially masked (exercises the tiled path).
    loss = skipgram_loss(embeddings, target_idx, context_idx, negative_idx, tb=8)
    loss = jax.block_until_ready(loss)

    ref = skipgram_loss_ref(embeddings, target_idx, context_idx, negative_idx)
    assert jnp.allclose(loss, ref, rtol=1e-5, atol=1e-4), (loss, ref)

    print("KERNEL_OK")
</pallas_src>

<mosaic_0001>
module attributes {stable_mosaic.version = 11 : i64} {
  func.func @kernel(%arg0: i32, %arg1: memref<8x32xf32, #tpu.memory_space<vmem>>, %arg2: memref<8x4x32xf32, #tpu.memory_space<vmem>>, %arg3: memref<1x1x1xf32, #tpu.memory_space<vmem>>) attributes {dimension_semantics = [#tpu.dimension_semantics<parallel>], iteration_bounds = array<i64: 2>, scalar_prefetch = 0 : i64, scratch_operands = 0 : i64, tpu.core_type = #tpu.core_type<tc>, window_params = [{transform_indices = @transform_0, window_bounds = array<i64: 8, 32>}, {transform_indices = @transform_1, window_bounds = array<i64: 8, 4, 32>}, {transform_indices = @transform_2, window_bounds = array<i64: 1, 1, 1>}]} {
    %c0 = arith.constant 0 : index
    %c0_0 = arith.constant 0 : index
    %0 = vector.load %arg1[%c0, %c0_0] : memref<8x32xf32, #tpu.memory_space<vmem>>, vector<8x32xf32>
    %c0_1 = arith.constant 0 : index
    %c0_2 = arith.constant 0 : index
    %c0_3 = arith.constant 0 : index
    %1 = vector.load %arg2[%c0_1, %c0_2, %c0_3] : memref<8x4x32xf32, #tpu.memory_space<vmem>>, vector<8x4x32xf32>
    %2 = vector.shape_cast %0 : vector<8x32xf32> to vector<8x1x32xf32>
    %3 = vector.broadcast %2 : vector<8x1x32xf32> to vector<8x4x32xf32>
    %4 = arith.mulf %3, %1 : vector<8x4x32xf32>
    %cst = arith.constant dense<0.000000e+00> : vector<8x4xf32>
    %5 = vector.multi_reduction <add>, %4, %cst [2] : vector<8x4x32xf32> to vector<8x4xf32>
    %6 = tpu.iota {dimensions = array<i32: 1>} : vector<8x4xi32>
    %c0_i32 = arith.constant 0 : i32
    %7 = vector.broadcast %c0_i32 : i32 to vector<8x4xi32>
    %8 = arith.cmpi eq, %6, %7 : vector<8x4xi32>
    %cst_4 = arith.constant 0.000000e+00 : f32
    %9 = vector.broadcast %cst_4 : f32 to vector<8x4xf32>
    %10 = arith.subf %9, %5 : vector<8x4xf32>
    %11 = arith.select %8, %5, %10 : vector<8x4xi1>, vector<8x4xf32>
    %cst_5 = arith.constant 0.000000e+00 : f32
    %12 = vector.broadcast %cst_5 : f32 to vector<8x4xf32>
    %13 = arith.minimumf %11, %12 : vector<8x4xf32>
    %14 = math.absf %11 : vector<8x4xf32>
    %cst_6 = arith.constant 0.000000e+00 : f32
    %15 = vector.broadcast %cst_6 : f32 to vector<8x4xf32>
    %16 = arith.subf %15, %14 : vector<8x4xf32>
    %17 = math.exp %16 : vector<8x4xf32>
    %18 = math.log1p %17 : vector<8x4xf32>
    %19 = arith.subf %13, %18 : vector<8x4xf32>
    %c8_i32 = arith.constant 8 : i32
    %20 = arith.muli %arg0, %c8_i32 : i32
    %21 = tpu.iota {dimensions = array<i32: 0>} : vector<8x4xi32>
    %22 = vector.broadcast %20 : i32 to vector<8x4xi32>
    %23 = arith.addi %22, %21 : vector<8x4xi32>
    %c10_i32 = arith.constant 10 : i32
    %24 = vector.broadcast %c10_i32 : i32 to vector<8x4xi32>
    %25 = arith.cmpi slt, %23, %24 : vector<8x4xi32>
    %26 = arith.extui %25 : vector<8x4xi1> to vector<8x4xi32>
    %27 = arith.sitofp %26 : vector<8x4xi32> to vector<8x4xf32>
    %28 = arith.mulf %19, %27 : vector<8x4xf32>
    %cst_7 = arith.constant dense<0.000000e+00> : vector<8xf32>
    %29 = vector.multi_reduction <add>, %28, %cst_7 [1] : vector<8x4xf32> to vector<8xf32>
    %30 = vector.shape_cast %29 : vector<8xf32> to vector<8x1xf32>
    %cst_8 = arith.constant dense<0.000000e+00> : vector<1xf32>
    %31 = vector.multi_reduction <add>, %30, %cst_8 [0] : vector<8x1xf32> to vector<1xf32>
    %32 = vector.shape_cast %31 : vector<1xf32> to vector<1x1xf32>
    %33 = vector.shape_cast %32 : vector<1x1xf32> to vector<1x1x1xf32>
    %c0_9 = arith.constant 0 : index
    %c0_10 = arith.constant 0 : index
    %c0_11 = arith.constant 0 : index
    %34 = vector.load %arg3[%c0_9, %c0_10, %c0_11] : memref<1x1x1xf32, #tpu.memory_space<vmem>>, vector<1x1x1xf32>
    tpu.vector_store %arg3[%c0_9, %c0_10, %c0_11], %33 {strides = array<i32>} : memref<1x1x1xf32, #tpu.memory_space<vmem>>, vector<1x1x1xf32>,
    return
  }
  func.func @transform_0(%arg0: i32) -> (i32, i32) {
    %c0_i32 = arith.constant 0 : i32
    %c0_i32_0 = arith.constant 0 : i32
    return %arg0, %c0_i32 : i32, i32
  }
  func.func @transform_1(%arg0: i32) -> (i32, i32, i32) {
    %c0_i32 = arith.constant 0 : i32
    %c0_i32_0 = arith.constant 0 : i32
    %c0_i32_1 = arith.constant 0 : i32
    return %arg0, %c0_i32, %c0_i32_0 : i32, i32, i32
  }
  func.func @transform_2(%arg0: i32) -> (i32, i32, i32) {
    %c0_i32 = arith.constant 0 : i32
    %c0_i32_0 = arith.constant 0 : i32
    %c0_i32_1 = arith.constant 0 : i32
    return %arg0, %c0_i32, %c0_i32_0 : i32, i32, i32
  }
}

</mosaic_0001>

<llo_original>
// kernel: tpu_custom_call.1
$region0: #{tpu_custom_call.1}
  #allocation0 [shape = 'u32[]', space=smem, size = 0x4, offset = 0x4, fixed_abs, tag = 'smem constant byte address 0x4 - core index']
  #allocation1 [shape = 'u32[144,128]{1,0:T(1,128)}', space=vmem, size = 0x12000, scoped, tag = 'internal scratch']
  %s0 = inlined_call_operand.hbm [shape: f32[16,32], index: 0, kind: input, shape index: {}]
  %s1 = inlined_call_operand.hbm [shape: f32[16,4,32], index: 1, kind: input, shape index: {}]
  %s2 = inlined_call_operand.vmem [shape: f32[2,1,1], index: 2, kind: output, shape index: {}]
  %s3 = sld [smem:[#allocation0]]
  $region49: #{tpu_custom_call.1} parent=0
    _
  %s5 = ssub.s32 1, %s3
  %s6 = scalar_select 0, %s5, %s3
  $region1: #{tpu_custom_call.1} parent=0
    #allocation2 [shape = 'u8[8192]{0}', space=vmem, size = 0x2000, scoped, tag = 'input window, operand 0']
    #allocation3 [shape = 's32[2]{0}', space=sflag, size = 0x8, scoped, tag = 'scoped memory for tpu_custom_call.1']
    #allocation4 [shape = 'u8[32768]{0}', space=vmem, size = 0x8000, scoped, tag = 'input window, operand 1']
    #allocation5 [shape = 's32[2]{0}', space=sflag, size = 0x8, scoped, tag = 'scoped memory for tpu_custom_call.1']
    %7 = vsyncpa [#allocation3], 0
    %s8 = scalar_lea.sflag [#allocation3], 1
    %9 = vsyncpa %s8, 0
    %10 = vsyncpa [#allocation5], 0
    %s11 = scalar_lea.sflag [#allocation5], 1
    %12 = vsyncpa %s11, 0
    loop: start=0, step=1, limit=4
    $region2: #{tpu_custom_call.1} parent=1 // loop_pre_header
      _
    $region3: #{tpu_custom_call.1} parent=1 // loop_header
      %s14 = sphi 0, %s18
      %p15 = scmp.ge.s32.totalorder %s14, 4
      %s24 = sphi 0, %s26
      %s27 = sphi 0, %s24
      %s28 = sphi 0, %s27
      %s44 = sphi 0, %s28
      %s50 = sphi 0, %s52
      %s53 = sphi 0, %s50
      %s54 = sphi 0, %s53
      %s70 = sphi 0, %s54
      %s76 = sphi 0, %s78
      %s79 = sphi 0, %s76
      %s80 = sphi 0, %s79
      %s96 = sphi 0, %s80
    $region4: #{tpu_custom_call.1} parent=1 // loop_header_branch
      %17 = sbr.rel (%p15) target = $region8
    $region5: #{tpu_custom_call.1} parent=1 // loop_body
      %s19 = ssub.s32 %s14, 1
      %s20 = ssub.s32 %s14, 2
      %s21 = sadd.s32 %s14, 1
      %s22 = ssub.s32 %s14, %s21
      %p23 = scmp.eq.s32.totalorder %s22, 0
      %s25 = sadd.s32 %s24, 1
      %s26 = scalar_select %p23, %s24, %s25
      %p29 = pneg %p23
      %p30 = scmp.eq.s32.totalorder %s14, 1
      %p31 = por %p29, %p30
      %p32 = scmp.ne.s32.totalorder %s24, %s27
      %p33 = scmp.eq.s32.totalorder %s14, 0
      %p34 = por %p32, %p33
      %p35 = scmp.ne.s32.totalorder %s24, %s27
      %p36 = scmp.eq.s32.totalorder %s19, 1
      %p37 = por %p35, %p36
      %p38 = scmp.ne.s32.totalorder %s27, %s28
      %p39 = scmp.eq.s32.totalorder %s19, 0
      %p40 = por %p38, %p39
      %p41 = scmp.ne.s32.totalorder %s27, %s28
      %p42 = scmp.eq.s32.totalorder %s20, 1
      %p43 = por %p41, %p42
      %p45 = scmp.ne.s32.totalorder %s28, %s44
      %p46 = scmp.eq.s32.totalorder %s20, 0
      %p47 = por %p45, %p46
      %s48 = ssub.s32 %s14, %s21
      %p49 = scmp.eq.s32.totalorder %s48, 0
      %s51 = sadd.s32 %s50, 1
      %s52 = scalar_select %p49, %s50, %s51
      %p55 = pneg %p49
      %p56 = scmp.eq.s32.totalorder %s14, 1
      %p57 = por %p55, %p56
      %p58 = scmp.ne.s32.totalorder %s50, %s53
      %p59 = scmp.eq.s32.totalorder %s14, 0
      %p60 = por %p58, %p59
      %p61 = scmp.ne.s32.totalorder %s50, %s53
      %p62 = scmp.eq.s32.totalorder %s19, 1
      %p63 = por %p61, %p62
      %p64 = scmp.ne.s32.totalorder %s53, %s54
      %p65 = scmp.eq.s32.totalorder %s19, 0
      %p66 = por %p64, %p65
      %p67 = scmp.ne.s32.totalorder %s53, %s54
      %p68 = scmp.eq.s32.totalorder %s20, 1
      %p69 = por %p67, %p68
      %p71 = scmp.ne.s32.totalorder %s54, %s70
      %p72 = scmp.eq.s32.totalorder %s20, 0
      %p73 = por %p71, %p72
      %s74 = ssub.s32 %s14, %s21
      %p75 = scmp.eq.s32.totalorder %s74, 0
      %s77 = sadd.s32 %s76, 1
      %s78 = scalar_select %p75, %s76, %s77
      %p81 = pneg %p75
      %p82 = scmp.eq.s32.totalorder %s14, 1
      %p83 = por %p81, %p82
      %p84 = scmp.ne.s32.totalorder %s76, %s79
      %p85 = scmp.eq.s32.totalorder %s14, 0
      %p86 = por %p84, %p85
      %p87 = scmp.ne.s32.totalorder %s76, %s79
      %p88 = scmp.eq.s32.totalorder %s19, 1
      %p89 = por %p87, %p88
      %p90 = scmp.ne.s32.totalorder %s79, %s80
      %p91 = scmp.eq.s32.totalorder %s19, 0
      %p92 = por %p90, %p91
      %p93 = scmp.ne.s32.totalorder %s79, %s80
      %p94 = scmp.eq.s32.totalorder %s20, 1
      %p95 = por %p93, %p94
      %p97 = scmp.ne.s32.totalorder %s80, %s96
      %p98 = scmp.eq.s32.totalorder %s20, 0
      %p99 = por %p97, %p98
      %p100 = scmp.le.s32.totalorder 1, %s14
      %p101 = scmp.lt.s32.totalorder %s14, 3
      %p102 = pnand %p100, %p101
      %p103 = pneg %p102
      // Predicated region
      $region9: #{tpu_custom_call.1} parent=5 // pred_check
        _
      $region10: #{tpu_custom_call.1} parent=5 // pred_check_branch
        %105 = sbr.rel (%p102) target = $region12
      $region11: #{tpu_custom_call.1} parent=5 // pred_region
        %s106 = ssub.s32 %s14, 1
      $region12: #{tpu_custom_call.1} parent=5 // pred_fallthru
        _
      %p107 = scmp.lt.s32.totalorder %s14, 2
      // Predicated region
      $region13: #{tpu_custom_call.1} parent=5 // pred_check
        %p108 = pneg %p107
      $region14: #{tpu_custom_call.1} parent=5 // pred_check_branch
        %110 = sbr.rel (%p108) target = $region16
      $region15: #{tpu_custom_call.1} parent=5 // pred_region
        // Predicated region
        $region17: #{tpu_custom_call.1} parent=15 // pred_check
          %p111 = pneg %p34
        $region18: #{tpu_custom_call.1} parent=15 // pred_check_branch
          %113 = sbr.rel (%p111) target = $region20
        $region19: #{tpu_custom_call.1} parent=15 // pred_region
          %s114 = sand.u32 %s24, 1
          %s115 = scalar_lea.sflag [#allocation3], %s114
          %s116 = sand.u32 %s24, 1
          %s117 = smul.addr %s116, 8
          %s118 = scalar_lea.vmem [#allocation2], %s117
          %s120 = ssub.s32 128, 128
          %121 = vsyncadd %s115, %s120
          %s122 = smul.addr %s14, 128
          %s123 = scalar_lea.hbm %s0, %s122
          %s125 = sshll.u32 %s118, 4
          %s126 = int_to_ptr.vmem [resolvable:$true] %s125
          %128 = dma.hbm_to_vmem [thread:$0]  %s123, 128, %s126, %s115
        $region20: #{tpu_custom_call.1} parent=15 // pred_fallthru
          _
        // Predicated region
        $region21: #{tpu_custom_call.1} parent=15 // pred_check
          %p129 = pneg %p60
        $region22: #{tpu_custom_call.1} parent=15 // pred_check_branch
          %131 = sbr.rel (%p129) target = $region24
        $region23: #{tpu_custom_call.1} parent=15 // pred_region
          %s132 = sand.u32 %s50, 1
          %s133 = scalar_lea.sflag [#allocation5], %s132
          %s134 = sand.u32 %s50, 1
          %s135 = smul.addr %s134, 32
          %s136 = scalar_lea.vmem [#allocation4], %s135
          %s137 = smul.u32 8, %s14
          %s139 = ssub.s32 512, 512
          %140 = vsyncadd %s133, %s139
          %s141 = smul.addr %s137, 64
          %s142 = scalar_lea.hbm %s1, %s141
          %s143 = sshll.u32 %s136, 4
          %s144 = int_to_ptr.vmem [resolvable:$true] %s143
          %149 = dma.hbm_to_vmem [thread:$0]  %s142, 512, %s144, %s133, 64, 64, 4
        $region24: #{tpu_custom_call.1} parent=15 // pred_fallthru
          _
      $region16: #{tpu_custom_call.1} parent=5 // pred_fallthru
        _
      %p150 = scmp.le.s32.totalorder 1, %s14
      %p151 = scmp.lt.s32.totalorder %s14, 3
      %p152 = pnand %p150, %p151
      %p153 = pneg %p152
      // Predicated region
      $region25: #{tpu_custom_call.1} parent=5 // pred_check
        _
      $region26: #{tpu_custom_call.1} parent=5 // pred_check_branch
        %155 = sbr.rel (%p152) target = $region28
      $region27: #{tpu_custom_call.1} parent=5 // pred_region
        %s156 = ssub.s32 %s14, 1
        %s157 = sand.u32 %s27, 1
        %s158 = scalar_lea.sflag [#allocation3], %s157
        %s159 = sand.u32 %s27, 1
        %s160 = smul.addr %s159, 8
        %s161 = scalar_lea.vmem [#allocation2], %s160
        // Predicated region
        $region29: #{tpu_custom_call.1} parent=27 // pred_check
          %p162 = pneg %p40
        $region30: #{tpu_custom_call.1} parent=27 // pred_check_branch
          %164 = sbr.rel (%p162) target = $region32
        $region31: #{tpu_custom_call.1} parent=27 // pred_region
          %165 = dma.done %s158, 128
        $region32: #{tpu_custom_call.1} parent=27 // pred_fallthru
          _
        %s166 = sand.u32 %s53, 1
        %s167 = scalar_lea.sflag [#allocation5], %s166
        %s168 = sand.u32 %s53, 1
        %s169 = smul.addr %s168, 32
        %s170 = scalar_lea.vmem [#allocation4], %s169
        // Predicated region
        $region33: #{tpu_custom_call.1} parent=27 // pred_check
          %p171 = pneg %p66
        $region34: #{tpu_custom_call.1} parent=27 // pred_check_branch
          %173 = sbr.rel (%p171) target = $region36
        $region35: #{tpu_custom_call.1} parent=27 // pred_region
          %174 = dma.done %s167, 512
        $region36: #{tpu_custom_call.1} parent=27 // pred_fallthru
          _
        %s175 = sand.u32 %s27, 1
        %s176 = scalar_lea.sflag [#allocation3], %s175
        %s177 = sand.u32 %s27, 1
        %s178 = smul.addr %s177, 8
        %s179 = scalar_lea.vmem [#allocation2], %s178
        %p180 = pneg %p40
        %p181 = pneg %p37
        %s182 = sand.u32 %s53, 1
        %s183 = scalar_lea.sflag [#allocation5], %s182
        %s184 = sand.u32 %s53, 1
        %s185 = smul.addr %s184, 32
        %s186 = scalar_lea.vmem [#allocation4], %s185
        %p187 = pneg %p66
        %p188 = pneg %p63
        %p189 = pneg %p92
        %p190 = pneg %p89
        %p191 = scmp.lt.s32.totalorder %s19, 1
        %s192 = scalar_select %p191, %s19, 1
        %s193 = scalar_lea.vmem %s2, %s192
        %s194 = smul.u32 8, %s19
        %p195 = scmp.lt.s32.totalorder %s19, 1
        %s196 = scalar_select %p195, %s19, 1
        %s197 = scalar_lea.vmem %s2, %s196
        %v198 = vld [vmem:[%s161] sm:$0xff]
        %v199 = vld [vmem:[%s170] sm:$0xf]
        %v200 = vld [vmem:[%s170 + $0x4] sm:$0xf]
        %v201 = vld [vmem:[%s170 + $0x8] sm:$0xf]
        %v202 = vld [vmem:[%s170 + $0xc] sm:$0xf]
        %v203 = vld [vmem:[%s170 + $0x10] sm:$0xf]
        %v204 = vld [vmem:[%s170 + $0x14] sm:$0xf]
        %v205 = vld [vmem:[%s170 + $0x18] sm:$0xf]
        %v206 = vld [vmem:[%s170 + $0x1c] sm:$0xf]
        %v208 = vcombine.high %v198, %v198
        %v210 = vunpack.c.l.s4 1966171168
        %v211 = vunpack.c.0.s8 %v210
        %v212 = vlaneseq
        %v213 = vshrl.u32 %v212, 7
        %v214 = vsub.s32 %v211, %v213
        %v215 = vrot.slane %v198, %v214
        %v217 = vunpack.c.l.s4 1966171168
        %v218 = vunpack.c.0.s8 %v217
        %v219 = vlaneseq
        %v220 = vshrl.u32 %v219, 7
        %v221 = vsub.s32 %v218, %v220
        %v222 = vrot.slane %v208, %v221
        %v223 = vcombine.high %v215, %v215
        %v224 = vcombine.high %v222, %v222
        %v226 = vunpack.c.l.s4 1966171168
        %v227 = vunpack.c.0.s8 %v226
        %v228 = vlaneseq
        %v229 = vshrl.u32 %v228, 7
        %v230 = vsub.s32 %v227, %v229
        %v231 = vrot.slane %v215, %v230
        %v233 = vunpack.c.l.s4 1966171168
        %v234 = vunpack.c.0.s8 %v233
        %v235 = vlaneseq
        %v236 = vshrl.u32 %v235, 7
        %v237 = vsub.s32 %v234, %v236
        %v238 = vrot.slane %v222, %v237
        %v240 = vunpack.c.l.s4 1966171168
        %v241 = vunpack.c.0.s8 %v240
        %v242 = vlaneseq
        %v243 = vshrl.u32 %v242, 7
        %v244 = vsub.s32 %v241, %v243
        %v245 = vrot.slane %v223, %v244
        %v247 = vunpack.c.l.s4 1966171168
        %v248 = vunpack.c.0.s8 %v247
        %v249 = vlaneseq
        %v250 = vshrl.u32 %v249, 7
        %v251 = vsub.s32 %v248, %v250
        %v252 = vrot.slane %v224, %v251
        %v253 = vcombine.high %v231, %v231
        %v254 = vcombine.high %v238, %v238
        %v255 = vcombine.high %v245, %v245
        %v256 = vcombine.high %v252, %v252
        %v257 = vlaneseq
        %v258 = vshrl.u32 %v257, 7
        %v259 = vsub.s32 0, %v258
        %v260 = vrot.slane %v231, %v259
        %v261 = vlaneseq
        %v262 = vshrl.u32 %v261, 7
        %v263 = vsub.s32 0, %v262
        %v264 = vrot.slane %v245, %v263
        %v265 = vlaneseq
        %v266 = vshrl.u32 %v265, 7
        %v267 = vsub.s32 0, %v266
        %v268 = vrot.slane %v253, %v267
        %v269 = vlaneseq
        %v270 = vshrl.u32 %v269, 7
        %v271 = vsub.s32 0, %v270
        %v272 = vrot.slane %v255, %v271
        %v273 = vlaneseq
        %v274 = vshrl.u32 %v273, 7
        %v275 = vsub.s32 0, %v274
        %v276 = vrot.slane %v238, %v275
        %v277 = vlaneseq
        %v278 = vshrl.u32 %v277, 7
        %v279 = vsub.s32 0, %v278
        %v280 = vrot.slane %v252, %v279
        %v281 = vlaneseq
        %v282 = vshrl.u32 %v281, 7
        %v283 = vsub.s32 0, %v282
        %v284 = vrot.slane %v254, %v283
        %v285 = vlaneseq
        %v286 = vshrl.u32 %v285, 7
        %v287 = vsub.s32 0, %v286
        %v288 = vrot.slane %v256, %v287
        %v297 = vmul.f32 %v260, %v199
        %v298 = vmul.f32 %v264, %v200
        %v299 = vmul.f32 %v268, %v201
        %v300 = vmul.f32 %v272, %v202
        %v301 = vmul.f32 %v276, %v203
        %v302 = vmul.f32 %v280, %v204
        %v303 = vmul.f32 %v284, %v205
        %v304 = vmul.f32 %v288, %v206
        %vm305 = vcmask 257024
        %v306 = vsel %vm305, %v297, 0.0
        %307 = vadd.xlane.f32.xlu0 %v306
        %v308 = vpop.xlane.xlu0 %307
        %v309 = vsel %vm305, %v298, 0.0
        %310 = vadd.xlane.f32.xlu0 %v309
        %v311 = vpop.xlane.xlu0 %310
        %v312 = vsel %vm305, %v299, 0.0
        %313 = vadd.xlane.f32.xlu0 %v312
        %v314 = vpop.xlane.xlu0 %313
        %v315 = vsel %vm305, %v300, 0.0
        %316 = vadd.xlane.f32.xlu0 %v315
        %v317 = vpop.xlane.xlu0 %316
        %v318 = vsel %vm305, %v301, 0.0
        %319 = vadd.xlane.f32.xlu0 %v318
        %v320 = vpop.xlane.xlu0 %319
        %v321 = vsel %vm305, %v302, 0.0
        %322 = vadd.xlane.f32.xlu0 %v321
        %v323 = vpop.xlane.xlu0 %322
        %v324 = vsel %vm305, %v303, 0.0
        %325 = vadd.xlane.f32.xlu0 %v324
        %v326 = vpop.xlane.xlu0 %325
        %v327 = vsel %vm305, %v304, 0.0
        %328 = vadd.xlane.f32.xlu0 %v327
        %v329 = vpop.xlane.xlu0 %328
        %v330 = vlaneseq
        %v331 = vand.u32 %v330, 127
        %vm332 = vcmp.eq.s32.totalorder %v331, 0
        %v333 = vsub.f32 0.0, %v308
        %v334 = vsub.f32 0.0, %v311
        %v335 = vsub.f32 0.0, %v314
        %v336 = vsub.f32 0.0, %v317
        %v337 = vsub.f32 0.0, %v320
        %v338 = vsub.f32 0.0, %v323
        %v339 = vsub.f32 0.0, %v326
        %v340 = vsub.f32 0.0, %v329
        %v349 = vlaneseq
        %v350 = vshrl.u32 %v349, 7
        %v351 = vsub.s32 %v331, %v350
        %v352 = vrot.slane %v308, %v351
        %v353 = vlaneseq
        %v354 = vshrl.u32 %v353, 7
        %v355 = vsub.s32 %v331, %v354
        %v356 = vrot.slane %v311, %v355
        %v357 = vlaneseq
        %v358 = vshrl.u32 %v357, 7
        %v359 = vsub.s32 %v331, %v358
        %v360 = vrot.slane %v314, %v359
        %v361 = vlaneseq
        %v362 = vshrl.u32 %v361, 7
        %v363 = vsub.s32 %v331, %v362
        %v364 = vrot.slane %v317, %v363
        %v365 = vlaneseq
        %v366 = vshrl.u32 %v365, 7
        %v367 = vsub.s32 %v331, %v366
        %v368 = vrot.slane %v320, %v367
        %v369 = vlaneseq
        %v370 = vshrl.u32 %v369, 7
        %v371 = vsub.s32 %v331, %v370
        %v372 = vrot.slane %v323, %v371
        %v373 = vlaneseq
        %v374 = vshrl.u32 %v373, 7
        %v375 = vsub.s32 %v331, %v374
        %v376 = vrot.slane %v326, %v375
        %v377 = vlaneseq
        %v378 = vshrl.u32 %v377, 7
        %v379 = vsub.s32 %v331, %v378
        %v380 = vrot.slane %v329, %v379
        %vm381 = vcmask 1041409
        %v382 = vsel %vm381, %v356, %v352
        %vm383 = vcmask 1042434
        %v384 = vsel %vm383, %v360, %v382
        %vm385 = vcmask 1043459
        %v386 = vsel %vm385, %v364, %v384
        %vm387 = vcmask 1044484
        %v388 = vsel %vm387, %v368, %v386
        %vm389 = vcmask 1045509
        %v390 = vsel %vm389, %v372, %v388
        %vm391 = vcmask 1046534
        %v392 = vsel %vm391, %v376, %v390
        %vm393 = vcmask 1047559
        %v394 = vsel %vm393, %v380, %v392
        %v404 = vlaneseq
        %v405 = vshrl.u32 %v404, 7
        %v406 = vsub.s32 %v331, %v405
        %v407 = vrot.slane %v333, %v406
        %v408 = vlaneseq
        %v409 = vshrl.u32 %v408, 7
        %v410 = vsub.s32 %v331, %v409
        %v411 = vrot.slane %v334, %v410
        %v412 = vlaneseq
        %v413 = vshrl.u32 %v412, 7
        %v414 = vsub.s32 %v331, %v413
        %v415 = vrot.slane %v335, %v414
        %v416 = vlaneseq
        %v417 = vshrl.u32 %v416, 7
        %v418 = vsub.s32 %v331, %v417
        %v419 = vrot.slane %v336, %v418
        %v420 = vlaneseq
        %v421 = vshrl.u32 %v420, 7
        %v422 = vsub.s32 %v331, %v421
        %v423 = vrot.slane %v337, %v422
        %v424 = vlaneseq
        %v425 = vshrl.u32 %v424, 7
        %v426 = vsub.s32 %v331, %v425
        %v427 = vrot.slane %v338, %v426
        %v428 = vlaneseq
        %v429 = vshrl.u32 %v428, 7
        %v430 = vsub.s32 %v331, %v429
        %v431 = vrot.slane %v339, %v430
        %v432 = vlaneseq
        %v433 = vshrl.u32 %v432, 7
        %v434 = vsub.s32 %v331, %v433
        %v435 = vrot.slane %v340, %v434
        %v436 = vsel %vm381, %v411, %v407
        %v437 = vsel %vm383, %v415, %v436
        %v438 = vsel %vm385, %v419, %v437
        %v439 = vsel %vm387, %v423, %v438
        %v440 = vsel %vm389, %v427, %v439
        %v441 = vsel %vm391, %v431, %v440
        %v442 = vsel %vm393, %v435, %v441
        %v444 = vsel %vm332, %v394, %v442
        %v445 = vmin.f32 %v444, 0.0
        %v446 = vand.u32 2147483647, %v444
        %v447 = vsub.f32 0.0, %v446
        %v448 = vmul.f32 %v447, 1.442695
        %v449 = vpow.pop %v448
        %v450 = vadd.f32 %v449, 1.0
        %v451 = vlog2.pop %v450
        %v452 = vmul.f32 %v451, 0.6931472
        %v453 = vmul.f32 -0.5, %v449
        %v454 = vadd.f32 %v453, 1.0
        %v455 = vmul.f32 %v454, %v449
        %v456 = vand.u32 2147483647, %v449
        %vm457 = vcmp.lt.f32.partialorder %v456, 0.0004427343
        %v458 = vsel %vm457, %v455, %v452
        %v459 = vsub.f32 %v445, %v458
        %s460 = smul.u32 %s19, 8
        %v461 = vlaneseq
        %v462 = vshrl.u32 %v461, 7
        %v463 = vstv %s460
        %v464 = vadd.s32 %v463, %v462
        %vm465 = vcmp.lt.s32.totalorder %v464, 10
        %v466 = vsel %vm465, 1, 0
        %v467 = vcvt.s32.f32 %v466
        %v468 = vmul.f32 %v459, %v467
        %vm469 = vcmask 31744
        %v470 = vsel %vm469, %v468, 0.0
        %471 = vadd.xlane.f32.xlu0 %v470
        %v472 = vpop.xlane.xlu0 %471
        %v473 = vrot.slane %v472, 4
        %v474 = vadd.f32 %v472, %v473
        %v475 = vrot.slane %v474, 2
        %v476 = vadd.f32 %v474, %v475
        %v477 = vrot.slane %v476, 1
        %v478 = vadd.f32 %v476, %v477
        %vm479 = vcmask 0
        %480 = vst.msk [vmem:[%s197] sm:$0x1] %vm479, %v478
        %p481 = scmp.lt.s32.totalorder %s19, 1
        %s482 = scalar_select %p481, %s19, 1
        %s483 = scalar_lea.vmem %s2, %s482
        // Predicated region
        $region37: #{tpu_custom_call.1} parent=27 // pred_check
          %p484 = pneg %p89
        $region38: #{tpu_custom_call.1} parent=27 // pred_check_branch
          %486 = sbr.rel (%p484) target = $region40
        $region39: #{tpu_custom_call.1} parent=27 // pred_region
          _
        $region40: #{tpu_custom_call.1} parent=27 // pred_fallthru
          _
      $region28: #{tpu_custom_call.1} parent=5 // pred_fallthru
        _
      %p487 = scmp.le.s32.totalorder 2, %s14
      // Predicated region
      $region41: #{tpu_custom_call.1} parent=5 // pred_check
        %p488 = pneg %p487
      $region42: #{tpu_custom_call.1} parent=5 // pred_check_branch
        %490 = sbr.rel (%p488) target = $region44
      $region43: #{tpu_custom_call.1} parent=5 // pred_region
        %s491 = ssub.s32 %s14, 2
        // Predicated region
        $region45: #{tpu_custom_call.1} parent=43 // pred_check
          %p492 = pneg %p95
        $region46: #{tpu_custom_call.1} parent=43 // pred_check_branch
          %494 = sbr.rel (%p492) target = $region48
        $region47: #{tpu_custom_call.1} parent=43 // pred_region
          %p495 = scmp.lt.s32.totalorder %s20, 1
          %s496 = scalar_select %p495, %s20, 1
          %s497 = scalar_lea.vmem %s2, %s496
        $region48: #{tpu_custom_call.1} parent=43 // pred_fallthru
          _
      $region44: #{tpu_custom_call.1} parent=5 // pred_fallthru
        _
    $region6: #{tpu_custom_call.1} parent=1 // loop_footer
      %s18 = sadd.s32 1, %s14
    $region7: #{tpu_custom_call.1} parent=1 // loop_footer_branch
      %13 = sbr.rel target = $region3
    $region8: #{tpu_custom_call.1} parent=1 // loop_exit
      _
    %498 = vsyncpa [#allocation3], 1
    %s499 = scalar_lea.sflag [#allocation3], 1
    %500 = vsyncpa %s499, 1
    %501 = vsyncpa [#allocation5], 1
    %s502 = scalar_lea.sflag [#allocation5], 1
    %503 = vsyncpa %s502, 1

</llo_original>
